<compile_context>
chip_gen: v5e
topology: v5e:2x2
jax: 0.10.0
libtpu: 0.0.40
codegen_flags: <defaults>
</compile_context>

<pallas_src>
import functools

import jax
import jax.numpy as jnp
from jax import lax
from jax.experimental import pallas as pl
from jax.experimental.pallas import tpu as pltpu


_LN_EPS = 1e-5
_SQRT_HALF = 0.7071067811865476


def _layernorm(x, gamma, beta):
    mu = jnp.mean(x, axis=-1, keepdims=True)
    xc = x - mu
    var = jnp.mean(xc * xc, axis=-1, keepdims=True)
    return xc * lax.rsqrt(var + _LN_EPS) * gamma + beta


def _erf(x):
    # Abramowitz & Stegun 7.1.26 rational approximation (|err| < 1.5e-7),
    # built only from exp/abs/where so it lowers cleanly in Mosaic.
    a1, a2, a3, a4, a5 = (0.254829592, -0.284496736, 1.421413741,
                          -1.453152027, 1.061405429)
    p = 0.3275911
    ax = jnp.abs(x)
    t = 1.0 / (1.0 + p * ax)
    poly = ((((a5 * t + a4) * t + a3) * t + a2) * t + a1) * t
    y = 1.0 - poly * jnp.exp(-ax * ax)
    return jnp.where(x < 0, -y, y)


def _gelu(x):
    # Exact (erf-based) GELU, matching torch.nn.GELU() default semantics.
    return 0.5 * x * (1.0 + _erf(x * _SQRT_HALF))


# ---------------------------------------------------------------------------
# Kernels
# ---------------------------------------------------------------------------
def _patch_embed_kernel(xp_ref, w_ref, b_ref, pos_ref, o_ref):
    # xp : (B*N, C*p*p) im2col patches   w : (C*p*p, D)
    # b  : (1, D)                        pos: (B*N, D)
    y = jnp.dot(xp_ref[...], w_ref[...], preferred_element_type=jnp.float32)
    o_ref[...] = (y + b_ref[...] + pos_ref[...]).astype(o_ref.dtype)


def _transformer_layer_kernel(x_ref, ag_ref, ab_ref, wqkv_ref, wo_ref, bo_ref,
                              fg_ref, fb_ref, w1_ref, b1_ref, w2_ref, b2_ref,
                              *rest, batch, seq, heads, dim_head, final_ln):
    # x     : (B*N, D)
    # wqkv  : (D, 3*inner)   fused q/k/v projection (single lane-dense matmul)
    # wo    : (heads, dh, D) per-head output projection (head on major axis)
    if final_ln:
        fng_ref, fnb_ref, o_ref = rest
    else:
        (o_ref,) = rest

    x = x_ref[...]
    inner = heads * dim_head
    scale = dim_head ** -0.5

    # ----- multi-head self-attention (pre-LN) + residual ---------------------
    h = _layernorm(x, ag_ref[...], ab_ref[...])
    qkv = jnp.dot(h, wqkv_ref[...], preferred_element_type=jnp.float32)

    attn_out = jnp.zeros_like(x)
    for hh in range(heads):                     # static unroll over heads
        lo = hh * dim_head
        hi = lo + dim_head
        q = qkv[:, lo:hi].reshape(batch, seq, dim_head)
        k = qkv[:, inner + lo:inner + hi].reshape(batch, seq, dim_head)
        v = qkv[:, 2 * inner + lo:2 * inner + hi].reshape(batch, seq, dim_head)

        dots = jnp.einsum('bqd,bkd->bqk', q, k,
                          preferred_element_type=jnp.float32) * scale
        dots = dots - jnp.max(dots, axis=-1, keepdims=True)
        e = jnp.exp(dots)
        probs = e / jnp.sum(e, axis=-1, keepdims=True)
        oh = jnp.einsum('bqk,bkd->bqd', probs, v,
                        preferred_element_type=jnp.float32)
        attn_out = attn_out + jnp.dot(oh.reshape(batch * seq, dim_head),
                                      wo_ref[hh],
                                      preferred_element_type=jnp.float32)
    x = x + attn_out + bo_ref[...]

    # ----- feed-forward (pre-LN) + residual -----------------------------------
    h = _layernorm(x, fg_ref[...], fb_ref[...])
    h = jnp.dot(h, w1_ref[...], preferred_element_type=jnp.float32) + b1_ref[...]
    h = _gelu(h)
    h = jnp.dot(h, w2_ref[...], preferred_element_type=jnp.float32) + b2_ref[...]
    x = x + h

    # ----- final LayerNorm fused into the last layer --------------------------
    if final_ln:
        x = _layernorm(x, fng_ref[...], fnb_ref[...])
    o_ref[...] = x.astype(o_ref.dtype)


def _final_norm_kernel(x_ref, g_ref, b_ref, o_ref):
    # Only used for depth == 0 (otherwise the final LN is fused into the last
    # transformer layer kernel).
    o_ref[...] = _layernorm(x_ref[...], g_ref[...], b_ref[...]).astype(o_ref.dtype)


# ---------------------------------------------------------------------------
# pallas_call plumbing
# ---------------------------------------------------------------------------
def _full_spec(shape):
    zeros = (0,) * len(shape)
    return pl.BlockSpec(shape, lambda i: zeros)


def _call(kernel, args, out_shape):
    return pl.pallas_call(
        kernel,
        out_shape=jax.ShapeDtypeStruct(out_shape, jnp.float32),
        grid=(1,),
        in_specs=[_full_spec(a.shape) for a in args],
        out_specs=_full_spec(out_shape),
        compiler_params=pltpu.CompilerParams(
            dimension_semantics=("arbitrary",)),
    )(*args)


def vit_forward(img, params, *, patch_size, heads):
    """Pallas forward of ViT (eval mode; num_classes=None, new_shape=None)."""
    B, C, H, W = img.shape
    p = patch_size
    nh, nw = H // p, W // p
    N = nh * nw
    D = params['proj_w'].shape[0]

    # -- PatchEmbed: stride==kernel conv == im2col + one matmul --------------
    xp = (img.reshape(B, C, nh, p, nw, p)
             .transpose(0, 2, 4, 1, 3, 5)
             .reshape(B * N, C * p * p))
    w_proj = params['proj_w'].reshape(D, C * p * p).T          # (C*p*p, D)
    b_proj = params['proj_b'].reshape(1, D)
    pos = jnp.tile(params['pos'][0], (B, 1))                   # (B*N, D)

    x = _call(_patch_embed_kernel, (xp, w_proj, b_proj, pos), (B * N, D))

    # -- Transformer layers (one fused kernel per layer) ---------------------
    n_layers = len(params['layers'])
    for li, lp in enumerate(params['layers']):
        inner = lp['w_qkv'].shape[0] // 3
        dh = inner // heads
        wqkv = lp['w_qkv'].T                                    # (D, 3*inner)
        wo = lp['w_o'].T.reshape(heads, dh, D)                  # (heads, dh, D)

        is_last = li == n_layers - 1
        args = [x,
                lp['attn_ln_g'].reshape(1, D), lp['attn_ln_b'].reshape(1, D),
                wqkv, wo, lp['b_o'].reshape(1, D),
                lp['ff_ln_g'].reshape(1, D), lp['ff_ln_b'].reshape(1, D),
                lp['w1'].T, lp['b1'].reshape(1, -1),
                lp['w2'].T, lp['b2'].reshape(1, D)]
        if is_last:
            args += [params['final_ln_g'].reshape(1, D),
                     params['final_ln_b'].reshape(1, D)]
        x = _call(functools.partial(_transformer_layer_kernel,
                                    batch=B, seq=N, heads=heads, dim_head=dh,
                                    final_ln=is_last),
                  tuple(args), (B * N, D))

    if n_layers == 0:   # degenerate case: just the final LayerNorm
        x = _call(_final_norm_kernel,
                  (x, params['final_ln_g'].reshape(1, D),
                   params['final_ln_b'].reshape(1, D)),
                  (B * N, D))

    # -- rearrange 'b (h w) c -> b c h w'; upsample/conv_head are Identity ----
    new_dim = int(N ** 0.5)
    return x.reshape(B, new_dim, new_dim, D).transpose(0, 3, 1, 2)


# ---------------------------------------------------------------------------
# Pure-JAX reference (mirrors the PyTorch module exactly)
# ---------------------------------------------------------------------------
def _reference(img, params, *, patch_size, heads):
    p = patch_size
    B = img.shape[0]
    D = params['proj_w'].shape[0]

    y = lax.conv_general_dilated(
        img, params['proj_w'], window_strides=(p, p), padding='VALID',
        dimension_numbers=('NCHW', 'OIHW', 'NCHW'))
    y = y + params['proj_b'][None, :, None, None]
    _, _, nh, nw = y.shape
    x = y.reshape(B, D, nh * nw).transpose(0, 2, 1)            # (B, N, D)
    x = x + params['pos']

    def ln(z, g, b):
        mu = z.mean(-1, keepdims=True)
        var = ((z - mu) ** 2).mean(-1, keepdims=True)
        return (z - mu) / jnp.sqrt(var + _LN_EPS) * g + b

    for lp in params['layers']:
        h = ln(x, lp['attn_ln_g'], lp['attn_ln_b'])
        qkv = h @ lp['w_qkv'].T
        q, k, v = jnp.split(qkv, 3, axis=-1)
        inner = q.shape[-1]
        dh = inner // heads

        def split_heads(t):
            return t.reshape(B, -1, heads, dh).transpose(0, 2, 1, 3)

        q, k, v = split_heads(q), split_heads(k), split_heads(v)
        dots = jnp.einsum('bhqd,bhkd->bhqk', q, k) * (dh ** -0.5)
        attn = jax.nn.softmax(dots, axis=-1)
        o = jnp.einsum('bhqk,bhkd->bhqd', attn, v)
        o = o.transpose(0, 2, 1, 3).reshape(B, -1, inner)
        o = o @ lp['w_o'].T + lp['b_o']
        x = x + o

        h = ln(x, lp['ff_ln_g'], lp['ff_ln_b'])
        h = h @ lp['w1'].T + lp['b1']
        h = jax.nn.gelu(h, approximate=False)
        h = h @ lp['w2'].T + lp['b2']
        x = x + h

    x = ln(x, params['final_ln_g'], params['final_ln_b'])
    n = x.shape[1]
    nd = int(n ** 0.5)
    return x.reshape(B, nd, nd, D).transpose(0, 3, 1, 2)


if __name__ == "__main__":
    # Small ViT consistent with the module: image 16x16, patch 4 -> 16 tokens,
    # dim=32, depth=2, heads=4 (dim_head=8), mlp_dim=64, channels=4, batch=2.
    B, C, IMG, P = 2, 4, 16, 4
    DIM, DEPTH, HEADS, DIM_HEAD, MLP = 32, 2, 4, 8, 64
    N = (IMG // P) ** 2
    INNER = HEADS * DIM_HEAD

    key = jax.random.PRNGKey(0)
    kit = iter(jax.random.split(key, 40))

    def rnd(shape, scale=0.1):
        return scale * jax.random.normal(next(kit), shape, dtype=jnp.float32)

    params = {
        'proj_w': rnd((DIM, C, P, P), 0.2),
        'proj_b': rnd((DIM,), 0.1),
        'pos': rnd((1, N, DIM), 0.5),
        'layers': [],
        'final_ln_g': 1.0 + rnd((DIM,), 0.1),
        'final_ln_b': rnd((DIM,), 0.1),
    }
    for _ in range(DEPTH):
        params['layers'].append({
            'attn_ln_g': 1.0 + rnd((DIM,), 0.1),
            'attn_ln_b': rnd((DIM,), 0.1),
            'w_qkv': rnd((3 * INNER, DIM), 0.15),
            'w_o': rnd((DIM, INNER), 0.15),
            'b_o': rnd((DIM,), 0.1),
            'ff_ln_g': 1.0 + rnd((DIM,), 0.1),
            'ff_ln_b': rnd((DIM,), 0.1),
            'w1': rnd((MLP, DIM), 0.15),
            'b1': rnd((MLP,), 0.1),
            'w2': rnd((DIM, MLP), 0.15),
            'b2': rnd((DIM,), 0.1),
        })

    img = jax.random.normal(next(kit), (B, C, IMG, IMG), dtype=jnp.float32)

    out = jax.block_until_ready(vit_forward(img, params, patch_size=P, heads=HEADS))
    ref = jax.block_until_ready(_reference(img, params, patch_size=P, heads=HEADS))

    assert out.shape == (B, DIM, IMG // P, IMG // P), out.shape
    assert jnp.allclose(out, ref, atol=1e-4, rtol=1e-4), \
        float(jnp.max(jnp.abs(out - ref)))
    print("KERNEL_OK")
</pallas_src>

<mosaic_0001>
module attributes {stable_mosaic.version = 11 : i64} {
  func.func @_patch_embed_kernel(%arg0: i32, %arg1: memref<32x64xf32, #tpu.memory_space<vmem>>, %arg2: memref<64x32xf32, #tpu.memory_space<vmem>>, %arg3: memref<1x32xf32, #tpu.memory_space<vmem>>, %arg4: memref<32x32xf32, #tpu.memory_space<vmem>>, %arg5: memref<32x32xf32, #tpu.memory_space<vmem>>) attributes {dimension_semantics = [#tpu.dimension_semantics<arbitrary>], iteration_bounds = array<i64: 1>, scalar_prefetch = 0 : i64, scratch_operands = 0 : i64, tpu.core_type = #tpu.core_type<tc>, window_params = [{pipeline_mode = #tpu.pipeline_mode<synchronous>, transform_indices = @transform_0, window_bounds = array<i64: 32, 64>}, {pipeline_mode = #tpu.pipeline_mode<synchronous>, transform_indices = @transform_1, window_bounds = array<i64: 64, 32>}, {pipeline_mode = #tpu.pipeline_mode<synchronous>, transform_indices = @transform_2, window_bounds = array<i64: 1, 32>}, {pipeline_mode = #tpu.pipeline_mode<synchronous>, transform_indices = @transform_3, window_bounds = array<i64: 32, 32>}, {pipeline_mode = #tpu.pipeline_mode<synchronous>, transform_indices = @transform_4, window_bounds = array<i64: 32, 32>}]} {
    %c0 = arith.constant 0 : index
    %c0_0 = arith.constant 0 : index
    %0 = vector.load %arg1[%c0, %c0_0] : memref<32x64xf32, #tpu.memory_space<vmem>>, vector<32x64xf32>
    %c0_1 = arith.constant 0 : index
    %c0_2 = arith.constant 0 : index
    %1 = vector.load %arg2[%c0_1, %c0_2] : memref<64x32xf32, #tpu.memory_space<vmem>>, vector<64x32xf32>
    %cst = arith.constant dense<0.000000e+00> : vector<32x32xf32>
    %2 = tpu.matmul %0, %1, %cst {dimension_numbers = #tpu.dot_dimension_numbers<[1], [0], [0], [1], [0, 0, 1, 1], [], []>} : vector<32x64xf32>, vector<64x32xf32>, vector<32x32xf32> -> vector<32x32xf32>
    %c0_3 = arith.constant 0 : index
    %c0_4 = arith.constant 0 : index
    %3 = vector.load %arg3[%c0_3, %c0_4] : memref<1x32xf32, #tpu.memory_space<vmem>>, vector<1x32xf32>
    %4 = vector.broadcast %3 : vector<1x32xf32> to vector<32x32xf32>
    %5 = arith.addf %2, %4 : vector<32x32xf32>
    %c0_5 = arith.constant 0 : index
    %c0_6 = arith.constant 0 : index
    %6 = vector.load %arg4[%c0_5, %c0_6] : memref<32x32xf32, #tpu.memory_space<vmem>>, vector<32x32xf32>
    %7 = arith.addf %5, %6 : vector<32x32xf32>
    %c0_7 = arith.constant 0 : index
    %c0_8 = arith.constant 0 : index
    %8 = vector.load %arg5[%c0_7, %c0_8] : memref<32x32xf32, #tpu.memory_space<vmem>>, vector<32x32xf32>
    tpu.vector_store %arg5[%c0_7, %c0_8], %7 {strides = array<i32>} : memref<32x32xf32, #tpu.memory_space<vmem>>, vector<32x32xf32>,
    return
  }
  func.func @transform_0(%arg0: i32) -> (i32, i32) {
    %c0_i32 = arith.constant 0 : i32
    %c0_i32_0 = arith.constant 0 : i32
    %c0_i32_1 = arith.constant 0 : i32
    return %c0_i32, %c0_i32_0 : i32, i32
  }
  func.func @transform_1(%arg0: i32) -> (i32, i32) {
    %c0_i32 = arith.constant 0 : i32
    %c0_i32_0 = arith.constant 0 : i32
    %c0_i32_1 = arith.constant 0 : i32
    return %c0_i32, %c0_i32_0 : i32, i32
  }
  func.func @transform_2(%arg0: i32) -> (i32, i32) {
    %c0_i32 = arith.constant 0 : i32
    %c0_i32_0 = arith.constant 0 : i32
    %c0_i32_1 = arith.constant 0 : i32
    return %c0_i32, %c0_i32_0 : i32, i32
  }
  func.func @transform_3(%arg0: i32) -> (i32, i32) {
    %c0_i32 = arith.constant 0 : i32
    %c0_i32_0 = arith.constant 0 : i32
    %c0_i32_1 = arith.constant 0 : i32
    return %c0_i32, %c0_i32_0 : i32, i32
  }
  func.func @transform_4(%arg0: i32) -> (i32, i32) {
    %c0_i32 = arith.constant 0 : i32
    %c0_i32_0 = arith.constant 0 : i32
    %c0_i32_1 = arith.constant 0 : i32
    return %c0_i32, %c0_i32_0 : i32, i32
  }
}

</mosaic_0001>

<llo_original>
// kernel: tpu_custom_call.1
$region0: #{tpu_custom_call.1}
  #allocation0 [shape = 'u32[]', space=smem, size = 0x4, offset = 0x4, fixed_abs, tag = 'smem constant byte address 0x4 - core index']
  #allocation1 [shape = 'u32[72,128]{1,0:T(1,128)}', space=vmem, size = 0x9000, scoped, tag = 'internal scratch']
  %s0 = inlined_call_operand.vmem [shape: f32[32,64], index: 0, kind: input, shape index: {}]
  %s1 = inlined_call_operand.vmem [shape: f32[64,32], index: 1, kind: input, shape index: {}]
  %s2 = inlined_call_operand.vmem [shape: f32[1,32], index: 2, kind: input, shape index: {}]
  %s3 = inlined_call_operand.vmem [shape: f32[32,32], index: 3, kind: input, shape index: {}]
  %s4 = inlined_call_operand.hbm [shape: f32[32,32], index: 4, kind: output, shape index: {}]
  %s5 = sld [smem:[#allocation0]]
  $region26: #{tpu_custom_call.1} parent=0
    _
  %s7 = ssub.s32 1, %s5
  %s8 = scalar_select 0, %s7, %s5
  $region1: #{tpu_custom_call.1} parent=0
    #allocation2 [shape = 'u8[16384]{0}', space=vmem, size = 0x4000, scoped, tag = 'output window, operand 0, single buffered']
    #allocation3 [shape = 's32[1]{0}', space=sflag, size = 0x4, scoped, tag = 'scoped memory for tpu_custom_call.1']
    %9 = vsyncpa [#allocation3], 0
    // Predicated region
    $region2: #{tpu_custom_call.1} parent=1 // pred_check
      _
    $region3: #{tpu_custom_call.1} parent=1 // pred_check_branch
      %11 = sbr.rel (0) target = $region5
    $region4: #{tpu_custom_call.1} parent=1 // pred_region
      _
    $region5: #{tpu_custom_call.1} parent=1 // pred_fallthru
      _
    // Predicated region
    $region6: #{tpu_custom_call.1} parent=1 // pred_check
      _
    $region7: #{tpu_custom_call.1} parent=1 // pred_check_branch
      %13 = sbr.rel (0) target = $region9
    $region8: #{tpu_custom_call.1} parent=1 // pred_region
      _
    $region9: #{tpu_custom_call.1} parent=1 // pred_fallthru
      _
    // Predicated region
    $region10: #{tpu_custom_call.1} parent=1 // pred_check
      _
    $region11: #{tpu_custom_call.1} parent=1 // pred_check_branch
      %15 = sbr.rel (0) target = $region13
    $region12: #{tpu_custom_call.1} parent=1 // pred_region
      _
    $region13: #{tpu_custom_call.1} parent=1 // pred_fallthru
      _
    // Predicated region
    $region14: #{tpu_custom_call.1} parent=1 // pred_check
      _
    $region15: #{tpu_custom_call.1} parent=1 // pred_check_branch
      %17 = sbr.rel (0) target = $region17
    $region16: #{tpu_custom_call.1} parent=1 // pred_region
      _
    $region17: #{tpu_custom_call.1} parent=1 // pred_fallthru
      _
    %v18 = vld [vmem:[%s0] sm:$0xff]
    %v19 = vld [vmem:[%s0 + $0x8] sm:$0xff]
    %v20 = vld [vmem:[%s0 + $0x10] sm:$0xff]
    %v21 = vld [vmem:[%s0 + $0x18] sm:$0xff]
    %v22 = vld [vmem:[%s1] sm:$0xff]
    %v23 = vld [vmem:[%s1 + $0x8] sm:$0xff]
    %v24 = vld [vmem:[%s1 + $0x10] sm:$0xff]
    %v25 = vld [vmem:[%s1 + $0x18] sm:$0xff]
    %v26 = vld [vmem:[%s1 + $0x20] sm:$0xff]
    %v27 = vld [vmem:[%s1 + $0x28] sm:$0xff]
    %v28 = vld [vmem:[%s1 + $0x30] sm:$0xff]
    %v29 = vld [vmem:[%s1 + $0x38] sm:$0xff]
    %v30 = vld [vmem:[%s2] sm:$0x1]
    %v32 = vperm.slane %v30, 0
    %vm34 = vcmask 523264
    %v36 = vsel %vm34, %v18, 0
    %v39 = vsel %vm34, %v19, 0
    %v42 = vsel %vm34, %v20, 0
    %v45 = vsel %vm34, %v21, 0
    %47 = vmatpush.msra.mxu0 0.0
    %48 = vmatpush.msra.mxu0 0.0
    %49 = vmatpush.msra.mxu0 0.0
    %50 = vmatpush.msra.mxu0 0.0
    %51 = vmatpush.msra.mxu0 0.0
    %52 = vmatpush.msra.mxu0 0.0
    %53 = vmatpush.msra.mxu0 0.0
    %54 = vmatpush.msra.mxu0 0.0
    %55 = vmatpush.msra.mxu0 %v29
    %56 = vmatpush.msra.mxu0 %v28
    %57 = vmatpush.msra.mxu0 %v27
    %58 = vmatpush.msra.mxu0 %v26
    %59 = vmatpush.msra.mxu0 %v25
    %60 = vmatpush.msra.mxu0 %v24
    %61 = vmatpush.msra.mxu0 %v23
    %62 = vmatpush.msra.mxu0 %v22
    %63 = vmatmul.f32.gmra.mxu0 %v36
    %v64 = vpop.f32.mrf.mxu0
    %v65 = vadd.f32 %v32, %v64
    %66 = vmatmul.f32.gmra.mxu0 %v39
    %v67 = vpop.f32.mrf.mxu0
    %v68 = vadd.f32 %v32, %v67
    %69 = vmatmul.f32.gmra.mxu0 %v42
    %v70 = vpop.f32.mrf.mxu0
    %v71 = vadd.f32 %v32, %v70
    %72 = vmatmul.f32.gmra.mxu0 %v45
    %v73 = vpop.f32.mrf.mxu0
    %v74 = vadd.f32 %v32, %v73
    %75 = vdwg.mxu0
    %v76 = vld [vmem:[%s3] sm:$0xff]
    %v77 = vld [vmem:[%s3 + $0x8] sm:$0xff]
    %v78 = vld [vmem:[%s3 + $0x10] sm:$0xff]
    %v79 = vld [vmem:[%s3 + $0x18] sm:$0xff]
    %v80 = vadd.f32 %v65, %v76
    %v81 = vadd.f32 %v68, %v77
    %v82 = vadd.f32 %v71, %v78
    %v83 = vadd.f32 %v74, %v79
    %vm84 = vcmask 261120
    %85 = vst.msk [vmem:[#allocation2] sm:$0xff] %vm84, %v80
    %86 = vst.msk [vmem:[#allocation2 + $0x8] sm:$0xff] %vm84, %v81
    %87 = vst.msk [vmem:[#allocation2 + $0x10] sm:$0xff] %vm84, %v82
    %88 = vst.msk [vmem:[#allocation2 + $0x18] sm:$0xff] %vm84, %v83
    // Predicated region
    $region18: #{tpu_custom_call.1} parent=1 // pred_check
      _
    $region19: #{tpu_custom_call.1} parent=1 // pred_check_branch
      %90 = sbr.rel (0) target = $region21
    $region20: #{tpu_custom_call.1} parent=1 // pred_region
      %92 = vsyncadd [#allocation3], 0
      %s93 = sshll.u32 [#allocation2], 4
      %s94 = int_to_ptr.vmem [resolvable:$true] %s93
      %s95 = sshll.u32 %s4, 4
      %s96 = int_to_ptr.hbm [resolvable:$true] %s95
      %101 = dma.vmem_to_hbm [thread:$0]  %s94, 512, %s96, [#allocation3], 128, 128, 8
    $region21: #{tpu_custom_call.1} parent=1 // pred_fallthru
      _
    // Predicated region
    $region22: #{tpu_custom_call.1} parent=1 // pred_check
      _
    $region23: #{tpu_custom_call.1} parent=1 // pred_check_branch
      %103 = sbr.rel (0) target = $region25
    $region24: #{tpu_custom_call.1} parent=1 // pred_region
      %105 = dma.done [#allocation3], 512
    $region25: #{tpu_custom_call.1} parent=1 // pred_fallthru
      _
    %106 = vsyncpa [#allocation3], 1

</llo_original>
